<compile_context>
chip_gen: v7x
topology: tpu7x:2x2x1
jax: 0.10.0
libtpu: 0.0.40
codegen_flags: <defaults>
</compile_context>

<pallas_src>
import functools

import jax
import jax.numpy as jnp
from jax.experimental import pallas as pl
from jax.experimental.pallas import tpu as pltpu

NUM_HEADS = 5
EPS = 1e-12


def _mutan_kernel(vis_ref, lang_ref, wvt_ref, bv_ref, wlt_ref, bl_ref,
                  out_ref, *, num_heads):
    # vis_ref:  (Cv, t_hw)        lang_ref: (Cl, t_hw)
    # wvt_ref:  (H*Co, Cv)        bv_ref:   (H*Co, 1)
    # wlt_ref:  (H*Co, Cl)        bl_ref:   (H*Co, 1)
    # out_ref:  (Co, t_hw)                           (lane-dense when t_hw%128==0)
    v = jnp.tanh(
        jnp.dot(wvt_ref[...], vis_ref[...], preferred_element_type=jnp.float32)
        + bv_ref[...])
    l = jnp.tanh(
        jnp.dot(wlt_ref[...], lang_ref[...], preferred_element_type=jnp.float32)
        + bl_ref[...])
    prod = v * l                                   # (H*Co, t_hw)

    co = out_ref.shape[0]
    acc = prod[0:co, :]
    for h in range(1, num_heads):                  # aligned sublane slices
        acc = acc + prod[h * co:(h + 1) * co, :]

    f = jnp.tanh(acc)                              # (Co, t_hw)
    # Channel L2 norm = sublane reduction; eps placement matches PyTorch.
    norm = jnp.sqrt(jnp.sum(f * f, axis=0, keepdims=True)) + EPS
    out_ref[...] = (f / norm).astype(out_ref.dtype)


def _pick_spatial_tile(hw, tmax=2048):
    """Largest multiple of 128 that divides hw and is <= tmax, else full hw."""
    if hw % 128 != 0 or hw <= 128:
        return hw                     # full-dim fallback (still correct)
    t = min(hw, tmax)
    t -= t % 128
    while hw % t != 0:
        t -= 128
    return t


def mutan_fusion_pallas(vis_feat, lang_feat, wvt, bv, wlt, bl, *, t_hw=None):
    """vis_feat: (N, Cv, H, W) NCHW;  lang_feat: (N, Cl, H, W) NCHW.

    wvt: (NUM_HEADS*Co, Cv)   bv: (NUM_HEADS*Co, 1)
    wlt: (NUM_HEADS*Co, Cl)   bl: (NUM_HEADS*Co, 1)
    Returns (N, Co, H, W) NCHW, matching the PyTorch module.
    """
    n, cv, h, w = vis_feat.shape
    _, cl, _, _ = lang_feat.shape
    co = wvt.shape[0] // NUM_HEADS
    hw = h * w
    if t_hw is None:
        t_hw = _pick_spatial_tile(hw)
    assert hw % t_hw == 0, "spatial tile must divide H*W"

    # Free reshapes: NCHW is already (N, C, H*W)-contiguous.
    vis3d = vis_feat.reshape(n, cv, hw)
    lang3d = lang_feat.reshape(n, cl, hw)

    kernel = functools.partial(_mutan_kernel, num_heads=NUM_HEADS)

    out3d = pl.pallas_call(
        kernel,
        out_shape=jax.ShapeDtypeStruct((n, co, hw), jnp.float32),
        grid_spec=pltpu.PrefetchScalarGridSpec(
            num_scalar_prefetch=0,
            grid=(n, hw // t_hw),
            in_specs=[
                pl.BlockSpec((None, cv, t_hw), lambda b, j: (b, 0, j)),
                pl.BlockSpec((None, cl, t_hw), lambda b, j: (b, 0, j)),
                pl.BlockSpec((NUM_HEADS * co, cv), lambda b, j: (0, 0)),
                pl.BlockSpec((NUM_HEADS * co, 1), lambda b, j: (0, 0)),
                pl.BlockSpec((NUM_HEADS * co, cl), lambda b, j: (0, 0)),
                pl.BlockSpec((NUM_HEADS * co, 1), lambda b, j: (0, 0)),
            ],
            out_specs=pl.BlockSpec((None, co, t_hw), lambda b, j: (b, 0, j)),
        ),
        compiler_params=pltpu.CompilerParams(
            dimension_semantics=("parallel", "parallel")),
    )(vis3d, lang3d, wvt, bv, wlt, bl)

    return out3d.reshape(n, co, h, w)


def reference_mutan_fusion(vis_feat, lang_feat, head_params):
    """Pure-JAX mirror of the PyTorch forward (NCHW)."""
    outs = []
    for wv_h, bv_h, wl_h, bl_h in head_params:   # wv_h: (Co, Cv), bv_h: (Co,)
        v = jnp.tanh(jnp.einsum('nchw,oc->nohw', vis_feat, wv_h)
                     + bv_h[None, :, None, None])
        l = jnp.tanh(jnp.einsum('nchw,oc->nohw', lang_feat, wl_h)
                     + bl_h[None, :, None, None])
        outs.append(v * l)
    f = jnp.tanh(sum(outs))
    norm = jnp.sqrt(jnp.sum(f * f, axis=1, keepdims=True)) + EPS
    return f / norm


if __name__ == "__main__":
    # Small shapes consistent with the module (vis_reduced_size == hid_size
    # is required by the elementwise multiply in MutanHead).
    N, H, W = 2, 16, 16
    VIS_ORI, VIS_RED, LANG, HID = 32, 32, 48, 32
    assert VIS_RED == HID

    key = jax.random.PRNGKey(0)
    k_vis, k_lang, *k_heads = jax.random.split(key, 2 + 4 * NUM_HEADS)

    vis_feat = jax.random.normal(k_vis, (N, VIS_ORI, H, W), jnp.float32)
    lang_feat = jax.random.normal(k_lang, (N, LANG, H, W), jnp.float32)

    # Deterministic per-head Conv2d(1x1) params: weight (Co, Cin), bias (Co,)
    head_params = []
    for i in range(NUM_HEADS):
        kw_v, kb_v, kw_l, kb_l = k_heads[4 * i:4 * i + 4]
        wv_h = 0.1 * jax.random.normal(kw_v, (VIS_RED, VIS_ORI), jnp.float32)
        bv_h = 0.1 * jax.random.normal(kb_v, (VIS_RED,), jnp.float32)
        wl_h = 0.1 * jax.random.normal(kw_l, (HID, LANG), jnp.float32)
        bl_h = 0.1 * jax.random.normal(kb_l, (HID,), jnp.float32)
        head_params.append((wv_h, bv_h, wl_h, bl_h))

    # Pack all 5 heads along the output-channel (sublane) axis.
    # wvt: (5*Co, Cv), bv: (5*Co, 1)  -- rows h*Co:(h+1)*Co are head h.
    wvt_packed = jnp.concatenate([p[0] for p in head_params], axis=0)
    bv_packed = jnp.concatenate([p[1] for p in head_params])[:, None]
    wlt_packed = jnp.concatenate([p[2] for p in head_params], axis=0)
    bl_packed = jnp.concatenate([p[3] for p in head_params])[:, None]

    out = mutan_fusion_pallas(vis_feat, lang_feat,
                              wvt_packed, bv_packed, wlt_packed, bl_packed)
    out = jax.block_until_ready(out)

    ref = reference_mutan_fusion(vis_feat, lang_feat, head_params)
    assert out.shape == (N, VIS_RED, H, W)
    assert jnp.allclose(out, ref, atol=1e-5, rtol=1e-5)

    print("KERNEL_OK")
</pallas_src>

<mosaic_0001>
module attributes {stable_mosaic.version = 11 : i64} {
  func.func @_mutan_kernel(%arg0: i32, %arg1: i32, %arg2: memref<1x32x256xf32, #tpu.memory_space<vmem>>, %arg3: memref<1x48x256xf32, #tpu.memory_space<vmem>>, %arg4: memref<160x32xf32, #tpu.memory_space<vmem>>, %arg5: memref<160x1xf32, #tpu.memory_space<vmem>>, %arg6: memref<160x48xf32, #tpu.memory_space<vmem>>, %arg7: memref<160x1xf32, #tpu.memory_space<vmem>>, %arg8: memref<1x32x256xf32, #tpu.memory_space<vmem>>) attributes {dimension_semantics = [#tpu.dimension_semantics<parallel>, #tpu.dimension_semantics<parallel>], iteration_bounds = array<i64: 2, 1>, scalar_prefetch = 0 : i64, scratch_operands = 0 : i64, tpu.core_type = #tpu.core_type<tc>, window_params = [{transform_indices = @transform_0, window_bounds = array<i64: 1, 32, 256>}, {transform_indices = @transform_1, window_bounds = array<i64: 1, 48, 256>}, {pipeline_mode = #tpu.pipeline_mode<synchronous>, transform_indices = @transform_2, window_bounds = array<i64: 160, 32>}, {pipeline_mode = #tpu.pipeline_mode<synchronous>, transform_indices = @transform_3, window_bounds = array<i64: 160, 1>}, {pipeline_mode = #tpu.pipeline_mode<synchronous>, transform_indices = @transform_4, window_bounds = array<i64: 160, 48>}, {pipeline_mode = #tpu.pipeline_mode<synchronous>, transform_indices = @transform_5, window_bounds = array<i64: 160, 1>}, {transform_indices = @transform_6, window_bounds = array<i64: 1, 32, 256>}]} {
    %c0 = arith.constant 0 : index
    %c0_0 = arith.constant 0 : index
    %0 = vector.load %arg4[%c0, %c0_0] : memref<160x32xf32, #tpu.memory_space<vmem>>, vector<160x32xf32>
    %c0_1 = arith.constant 0 : index
    %c0_2 = arith.constant 0 : index
    %c0_3 = arith.constant 0 : index
    %1 = vector.load %arg2[%c0_1, %c0_2, %c0_3] : memref<1x32x256xf32, #tpu.memory_space<vmem>>, vector<1x32x256xf32>
    %2 = vector.shape_cast %1 : vector<1x32x256xf32> to vector<32x256xf32>
    %cst = arith.constant dense<0.000000e+00> : vector<160x256xf32>
    %3 = tpu.matmul %0, %2, %cst {dimension_numbers = #tpu.dot_dimension_numbers<[1], [0], [0], [1], [0, 0, 1, 1], [], []>} : vector<160x32xf32>, vector<32x256xf32>, vector<160x256xf32> -> vector<160x256xf32>
    %c0_4 = arith.constant 0 : index
    %c0_5 = arith.constant 0 : index
    %4 = vector.load %arg5[%c0_4, %c0_5] : memref<160x1xf32, #tpu.memory_space<vmem>>, vector<160x1xf32>
    %5 = vector.broadcast %4 : vector<160x1xf32> to vector<160x256xf32>
    %6 = arith.addf %3, %5 : vector<160x256xf32>
    %7 = math.tanh %6 : vector<160x256xf32>
    %c0_6 = arith.constant 0 : index
    %c0_7 = arith.constant 0 : index
    %8 = vector.load %arg6[%c0_6, %c0_7] : memref<160x48xf32, #tpu.memory_space<vmem>>, vector<160x48xf32>
    %c0_8 = arith.constant 0 : index
    %c0_9 = arith.constant 0 : index
    %c0_10 = arith.constant 0 : index
    %9 = vector.load %arg3[%c0_8, %c0_9, %c0_10] : memref<1x48x256xf32, #tpu.memory_space<vmem>>, vector<1x48x256xf32>
    %10 = vector.shape_cast %9 : vector<1x48x256xf32> to vector<48x256xf32>
    %cst_11 = arith.constant dense<0.000000e+00> : vector<160x256xf32>
    %11 = tpu.matmul %8, %10, %cst_11 {dimension_numbers = #tpu.dot_dimension_numbers<[1], [0], [0], [1], [0, 0, 1, 1], [], []>} : vector<160x48xf32>, vector<48x256xf32>, vector<160x256xf32> -> vector<160x256xf32>
    %c0_12 = arith.constant 0 : index
    %c0_13 = arith.constant 0 : index
    %12 = vector.load %arg7[%c0_12, %c0_13] : memref<160x1xf32, #tpu.memory_space<vmem>>, vector<160x1xf32>
    %13 = vector.broadcast %12 : vector<160x1xf32> to vector<160x256xf32>
    %14 = arith.addf %11, %13 : vector<160x256xf32>
    %15 = math.tanh %14 : vector<160x256xf32>
    %16 = arith.mulf %7, %15 : vector<160x256xf32>
    %17 = vector.extract_strided_slice %16 {offsets = [0, 0], sizes = [32, 256], strides = [1, 1]} : vector<160x256xf32> to vector<32x256xf32>
    %18 = vector.extract_strided_slice %16 {offsets = [32, 0], sizes = [32, 256], strides = [1, 1]} : vector<160x256xf32> to vector<32x256xf32>
    %19 = arith.addf %17, %18 : vector<32x256xf32>
    %20 = vector.extract_strided_slice %16 {offsets = [64, 0], sizes = [32, 256], strides = [1, 1]} : vector<160x256xf32> to vector<32x256xf32>
    %21 = arith.addf %19, %20 : vector<32x256xf32>
    %22 = vector.extract_strided_slice %16 {offsets = [96, 0], sizes = [32, 256], strides = [1, 1]} : vector<160x256xf32> to vector<32x256xf32>
    %23 = arith.addf %21, %22 : vector<32x256xf32>
    %24 = vector.extract_strided_slice %16 {offsets = [128, 0], sizes = [32, 256], strides = [1, 1]} : vector<160x256xf32> to vector<32x256xf32>
    %25 = arith.addf %23, %24 : vector<32x256xf32>
    %26 = math.tanh %25 : vector<32x256xf32>
    %27 = arith.mulf %26, %26 : vector<32x256xf32>
    %cst_14 = arith.constant dense<0.000000e+00> : vector<256xf32>
    %28 = vector.multi_reduction <add>, %27, %cst_14 [0] : vector<32x256xf32> to vector<256xf32>
    %29 = vector.shape_cast %28 : vector<256xf32> to vector<1x256xf32>
    %30 = math.sqrt %29 : vector<1x256xf32>
    %cst_15 = arith.constant 9.99999996E-13 : f32
    %31 = vector.broadcast %cst_15 : f32 to vector<1x256xf32>
    %32 = arith.addf %30, %31 : vector<1x256xf32>
    %33 = vector.broadcast %32 : vector<1x256xf32> to vector<32x256xf32>
    %34 = arith.divf %26, %33 : vector<32x256xf32>
    %c0_16 = arith.constant 0 : index
    %c0_17 = arith.constant 0 : index
    %c0_18 = arith.constant 0 : index
    %35 = vector.load %arg8[%c0_16, %c0_17, %c0_18] : memref<1x32x256xf32, #tpu.memory_space<vmem>>, vector<1x32x256xf32>
    %36 = vector.shape_cast %35 : vector<1x32x256xf32> to vector<32x256xf32>
    %37 = vector.shape_cast %34 : vector<32x256xf32> to vector<1x32x256xf32>
    tpu.vector_store %arg8[%c0_16, %c0_17, %c0_18], %37 {strides = array<i32>} : memref<1x32x256xf32, #tpu.memory_space<vmem>>, vector<1x32x256xf32>,
    return
  }
  func.func @transform_0(%arg0: i32, %arg1: i32) -> (i32, i32, i32) {
    %c0_i32 = arith.constant 0 : i32
    %c0_i32_0 = arith.constant 0 : i32
    return %arg0, %c0_i32, %arg1 : i32, i32, i32
  }
  func.func @transform_1(%arg0: i32, %arg1: i32) -> (i32, i32, i32) {
    %c0_i32 = arith.constant 0 : i32
    %c0_i32_0 = arith.constant 0 : i32
    return %arg0, %c0_i32, %arg1 : i32, i32, i32
  }
  func.func @transform_2(%arg0: i32, %arg1: i32) -> (i32, i32) {
    %c0_i32 = arith.constant 0 : i32
    %c0_i32_0 = arith.constant 0 : i32
    %c0_i32_1 = arith.constant 0 : i32
    return %c0_i32, %c0_i32_0 : i32, i32
  }
  func.func @transform_3(%arg0: i32, %arg1: i32) -> (i32, i32) {
    %c0_i32 = arith.constant 0 : i32
    %c0_i32_0 = arith.constant 0 : i32
    %c0_i32_1 = arith.constant 0 : i32
    return %c0_i32, %c0_i32_0 : i32, i32
  }
  func.func @transform_4(%arg0: i32, %arg1: i32) -> (i32, i32) {
    %c0_i32 = arith.constant 0 : i32
    %c0_i32_0 = arith.constant 0 : i32
    %c0_i32_1 = arith.constant 0 : i32
    return %c0_i32, %c0_i32_0 : i32, i32
  }
  func.func @transform_5(%arg0: i32, %arg1: i32) -> (i32, i32) {
    %c0_i32 = arith.constant 0 : i32
    %c0_i32_0 = arith.constant 0 : i32
    %c0_i32_1 = arith.constant 0 : i32
    return %c0_i32, %c0_i32_0 : i32, i32
  }
  func.func @transform_6(%arg0: i32, %arg1: i32) -> (i32, i32, i32) {
    %c0_i32 = arith.constant 0 : i32
    %c0_i32_0 = arith.constant 0 : i32
    return %arg0, %c0_i32, %arg1 : i32, i32, i32
  }
}

</mosaic_0001>

<llo_original>
// kernel: tpu_custom_call.1
$region0: #{tpu_custom_call.1}
  #allocation0 [shape = 'u32[]', space=smem, size = 0x4, offset = 0x4, fixed_abs, tag = 'smem constant byte address 0x4 - core index']
  #allocation1 [shape = 'u32[144,128]{1,0:T(1,128)}', space=vmem, size = 0x12000, scoped, tag = 'internal scratch']
  %s0 = inlined_call_operand.vmem [shape: f32[2,32,256], index: 0, kind: input, shape index: {}]
  %s1 = inlined_call_operand.vmem [shape: f32[2,48,256], index: 1, kind: input, shape index: {}]
  %s2 = inlined_call_operand.vmem [shape: f32[160,32], index: 2, kind: input, shape index: {}]
  %s3 = inlined_call_operand.vmem [shape: f32[160,1], index: 3, kind: input, shape index: {}]
  %s4 = inlined_call_operand.vmem [shape: f32[160,48], index: 4, kind: input, shape index: {}]
  %s5 = inlined_call_operand.vmem [shape: f32[160,1], index: 5, kind: input, shape index: {}]
  %s6 = inlined_call_operand.hbm [shape: f32[2,32,256], index: 6, kind: output, shape index: {}]
  %s7 = sld [smem:[#allocation0]]
  $region57: #{tpu_custom_call.1} parent=0
    _
  %s9 = ssub.s32 1, %s7
  %s10 = scalar_select 0, %s9, %s7
  $region1: #{tpu_custom_call.1} parent=0
    #allocation2 [shape = 'u8[65536]{0}', space=vmem, size = 0x10000, scoped, tag = 'output window, operand 0']
    #allocation3 [shape = 's32[2]{0}', space=sflag, size = 0x8, scoped, tag = 'scoped memory for tpu_custom_call.1']
    %11 = vsyncpa [#allocation3], 0
    %s12 = scalar_lea.sflag [#allocation3], 1
    %13 = vsyncpa %s12, 0
    loop: start=0, step=1, limit=4
    $region2: #{tpu_custom_call.1} parent=1 // loop_pre_header
      _
    $region3: #{tpu_custom_call.1} parent=1 // loop_header
      %s15 = sphi 0, %s19
      %p16 = scmp.ge.s32.totalorder %s15, 4
      %s22 = sphi 0, %s34
      %s23 = sphi 0, %s30
      %s24 = sphi 0, %s22
      %s25 = sphi 0, %s23
      %s26 = sphi 0, %s24
      %s27 = sphi 0, %s25
      %s39 = sphi 0, %s41
      %s42 = sphi 0, %s39
      %s43 = sphi 0, %s42
      %s59 = sphi 0, %s43
      %s67 = sphi 0, %s69
      %s70 = sphi 0, %s67
      %s71 = sphi 0, %s70
      %s87 = sphi 0, %s71
      %s91 = sphi 0, %s91
      %s93 = sphi 0, %s91
      %s94 = sphi 0, %s93
      %s108 = sphi 0, %s94
      %s112 = sphi 0, %s112
      %s114 = sphi 0, %s112
      %s115 = sphi 0, %s114
      %s129 = sphi 0, %s115
      %s133 = sphi 0, %s133
      %s135 = sphi 0, %s133
      %s136 = sphi 0, %s135
      %s150 = sphi 0, %s136
      %s154 = sphi 0, %s154
      %s156 = sphi 0, %s154
      %s157 = sphi 0, %s156
      %s171 = sphi 0, %s157
      %s179 = sphi 0, %s181
      %s182 = sphi 0, %s179
      %s183 = sphi 0, %s182
      %s199 = sphi 0, %s183
    $region4: #{tpu_custom_call.1} parent=1 // loop_header_branch
      %18 = sbr.rel (%p16) target = $region8
    $region5: #{tpu_custom_call.1} parent=1 // loop_body
      %s20 = ssub.s32 %s15, 1
      %s21 = ssub.s32 %s15, 2
      %s28 = sadd.s32 1, %s23
      %p29 = scmp.ge.s32.totalorder %s28, 1
      %s30 = scalar_select %p29, 0, %s28
      %s31 = sadd.s32 1, %s22
      %s32 = scalar_select %p29, %s31, %s22
      %p33 = scmp.ge.s32.totalorder %s32, 2
      %s34 = scalar_select %p33, 0, %s32
      %s35 = ssub.s32 %s22, %s34
      %s36 = ssub.s32 %s23, %s30
      %s37 = sor.u32 %s35, %s36
      %p38 = scmp.eq.s32.totalorder %s37, 0
      %s40 = sadd.s32 %s39, 1
      %s41 = scalar_select %p38, %s39, %s40
      %p44 = pneg %p38
      %p45 = scmp.eq.s32.totalorder %s15, 1
      %p46 = por %p44, %p45
      %p47 = scmp.ne.s32.totalorder %s39, %s42
      %p48 = scmp.eq.s32.totalorder %s15, 0
      %p49 = por %p47, %p48
      %p50 = scmp.ne.s32.totalorder %s39, %s42
      %p51 = scmp.eq.s32.totalorder %s20, 1
      %p52 = por %p50, %p51
      %p53 = scmp.ne.s32.totalorder %s42, %s43
      %p54 = scmp.eq.s32.totalorder %s20, 0
      %p55 = por %p53, %p54
      %p56 = scmp.ne.s32.totalorder %s42, %s43
      %p57 = scmp.eq.s32.totalorder %s21, 1
      %p58 = por %p56, %p57
      %p60 = scmp.ne.s32.totalorder %s43, %s59
      %p61 = scmp.eq.s32.totalorder %s21, 0
      %p62 = por %p60, %p61
      %s63 = ssub.s32 %s22, %s34
      %s64 = ssub.s32 %s23, %s30
      %s65 = sor.u32 %s63, %s64
      %p66 = scmp.eq.s32.totalorder %s65, 0
      %s68 = sadd.s32 %s67, 1
      %s69 = scalar_select %p66, %s67, %s68
      %p72 = pneg %p66
      %p73 = scmp.eq.s32.totalorder %s15, 1
      %p74 = por %p72, %p73
      %p75 = scmp.ne.s32.totalorder %s67, %s70
      %p76 = scmp.eq.s32.totalorder %s15, 0
      %p77 = por %p75, %p76
      %p78 = scmp.ne.s32.totalorder %s67, %s70
      %p79 = scmp.eq.s32.totalorder %s20, 1
      %p80 = por %p78, %p79
      %p81 = scmp.ne.s32.totalorder %s70, %s71
      %p82 = scmp.eq.s32.totalorder %s20, 0
      %p83 = por %p81, %p82
      %p84 = scmp.ne.s32.totalorder %s70, %s71
      %p85 = scmp.eq.s32.totalorder %s21, 1
      %p86 = por %p84, %p85
      %p88 = scmp.ne.s32.totalorder %s71, %s87
      %p89 = scmp.eq.s32.totalorder %s21, 0
      %p90 = por %p88, %p89
      %s92 = sadd.s32 %s91, 1
      %p95 = scmp.eq.s32.totalorder %s15, 1
      %p96 = scmp.ne.s32.totalorder %s91, %s93
      %p97 = scmp.eq.s32.totalorder %s15, 0
      %p98 = por %p96, %p97
      %p99 = scmp.ne.s32.totalorder %s91, %s93
      %p100 = scmp.eq.s32.totalorder %s20, 1
      %p101 = por %p99, %p100
      %p102 = scmp.ne.s32.totalorder %s93, %s94
      %p103 = scmp.eq.s32.totalorder %s20, 0
      %p104 = por %p102, %p103
      %p105 = scmp.ne.s32.totalorder %s93, %s94
      %p106 = scmp.eq.s32.totalorder %s21, 1
      %p107 = por %p105, %p106
      %p109 = scmp.ne.s32.totalorder %s94, %s108
      %p110 = scmp.eq.s32.totalorder %s21, 0
      %p111 = por %p109, %p110
      %s113 = sadd.s32 %s112, 1
      %p116 = scmp.eq.s32.totalorder %s15, 1
      %p117 = scmp.ne.s32.totalorder %s112, %s114
      %p118 = scmp.eq.s32.totalorder %s15, 0
      %p119 = por %p117, %p118
      %p120 = scmp.ne.s32.totalorder %s112, %s114
      %p121 = scmp.eq.s32.totalorder %s20, 1
      %p122 = por %p120, %p121
      %p123 = scmp.ne.s32.totalorder %s114, %s115
      %p124 = scmp.eq.s32.totalorder %s20, 0
      %p125 = por %p123, %p124
      %p126 = scmp.ne.s32.totalorder %s114, %s115
      %p127 = scmp.eq.s32.totalorder %s21, 1
      %p128 = por %p126, %p127
      %p130 = scmp.ne.s32.totalorder %s115, %s129
      %p131 = scmp.eq.s32.totalorder %s21, 0
      %p132 = por %p130, %p131
      %s134 = sadd.s32 %s133, 1
      %p137 = scmp.eq.s32.totalorder %s15, 1
      %p138 = scmp.ne.s32.totalorder %s133, %s135
      %p139 = scmp.eq.s32.totalorder %s15, 0
      %p140 = por %p138, %p139
      %p141 = scmp.ne.s32.totalorder %s133, %s135
      %p142 = scmp.eq.s32.totalorder %s20, 1
      %p143 = por %p141, %p142
      %p144 = scmp.ne.s32.totalorder %s135, %s136
      %p145 = scmp.eq.s32.totalorder %s20, 0
      %p146 = por %p144, %p145
      %p147 = scmp.ne.s32.totalorder %s135, %s136
      %p148 = scmp.eq.s32.totalorder %s21, 1
      %p149 = por %p147, %p148
      %p151 = scmp.ne.s32.totalorder %s136, %s150
      %p152 = scmp.eq.s32.totalorder %s21, 0
      %p153 = por %p151, %p152
      %s155 = sadd.s32 %s154, 1
      %p158 = scmp.eq.s32.totalorder %s15, 1
      %p159 = scmp.ne.s32.totalorder %s154, %s156
      %p160 = scmp.eq.s32.totalorder %s15, 0
      %p161 = por %p159, %p160
      %p162 = scmp.ne.s32.totalorder %s154, %s156
      %p163 = scmp.eq.s32.totalorder %s20, 1
      %p164 = por %p162, %p163
      %p165 = scmp.ne.s32.totalorder %s156, %s157
      %p166 = scmp.eq.s32.totalorder %s20, 0
      %p167 = por %p165, %p166
      %p168 = scmp.ne.s32.totalorder %s156, %s157
      %p169 = scmp.eq.s32.totalorder %s21, 1
      %p170 = por %p168, %p169
      %p172 = scmp.ne.s32.totalorder %s157, %s171
      %p173 = scmp.eq.s32.totalorder %s21, 0
      %p174 = por %p172, %p173
      %s175 = ssub.s32 %s22, %s34
      %s176 = ssub.s32 %s23, %s30
      %s177 = sor.u32 %s175, %s176
      %p178 = scmp.eq.s32.totalorder %s177, 0
      %s180 = sadd.s32 %s179, 1
      %s181 = scalar_select %p178, %s179, %s180
      %p184 = pneg %p178
      %p185 = scmp.eq.s32.totalorder %s15, 1
      %p186 = por %p184, %p185
      %p187 = scmp.ne.s32.totalorder %s179, %s182
      %p188 = scmp.eq.s32.totalorder %s15, 0
      %p189 = por %p187, %p188
      %p190 = scmp.ne.s32.totalorder %s179, %s182
      %p191 = scmp.eq.s32.totalorder %s20, 1
      %p192 = por %p190, %p191
      %p193 = scmp.ne.s32.totalorder %s182, %s183
      %p194 = scmp.eq.s32.totalorder %s20, 0
      %p195 = por %p193, %p194
      %p196 = scmp.ne.s32.totalorder %s182, %s183
      %p197 = scmp.eq.s32.totalorder %s21, 1
      %p198 = por %p196, %p197
      %p200 = scmp.ne.s32.totalorder %s183, %s199
      %p201 = scmp.eq.s32.totalorder %s21, 0
      %p202 = por %p200, %p201
      %p203 = scmp.le.s32.totalorder 1, %s15
      %p204 = scmp.lt.s32.totalorder %s15, 3
      %p205 = pnand %p203, %p204
      %p206 = pneg %p205
      // Predicated region
      $region9: #{tpu_custom_call.1} parent=5 // pred_check
        _
      $region10: #{tpu_custom_call.1} parent=5 // pred_check_branch
        %208 = sbr.rel (%p205) target = $region12
      $region11: #{tpu_custom_call.1} parent=5 // pred_region
        %s209 = ssub.s32 %s15, 1
        // Predicated region
        $region13: #{tpu_custom_call.1} parent=11 // pred_check
          %p210 = pneg %p104
        $region14: #{tpu_custom_call.1} parent=11 // pred_check_branch
          %212 = sbr.rel (%p210) target = $region16
        $region15: #{tpu_custom_call.1} parent=11 // pred_region
          _
        $region16: #{tpu_custom_call.1} parent=11 // pred_fallthru
          _
        // Predicated region
        $region17: #{tpu_custom_call.1} parent=11 // pred_check
          %p213 = pneg %p125
        $region18: #{tpu_custom_call.1} parent=11 // pred_check_branch
          %215 = sbr.rel (%p213) target = $region20
        $region19: #{tpu_custom_call.1} parent=11 // pred_region
          _
        $region20: #{tpu_custom_call.1} parent=11 // pred_fallthru
          _
        // Predicated region
        $region21: #{tpu_custom_call.1} parent=11 // pred_check
          %p216 = pneg %p146
        $region22: #{tpu_custom_call.1} parent=11 // pred_check_branch
          %218 = sbr.rel (%p216) target = $region24
        $region23: #{tpu_custom_call.1} parent=11 // pred_region
          _
        $region24: #{tpu_custom_call.1} parent=11 // pred_fallthru
          _
        // Predicated region
        $region25: #{tpu_custom_call.1} parent=11 // pred_check
          %p219 = pneg %p167
        $region26: #{tpu_custom_call.1} parent=11 // pred_check_branch
          %221 = sbr.rel (%p219) target = $region28
        $region27: #{tpu_custom_call.1} parent=11 // pred_region
          _
        $region28: #{tpu_custom_call.1} parent=11 // pred_fallthru
          _
      $region12: #{tpu_custom_call.1} parent=5 // pred_fallthru
        _
      %p222 = scmp.lt.s32.totalorder %s15, 2
      // Predicated region
      $region29: #{tpu_custom_call.1} parent=5 // pred_check
        %p223 = pneg %p222
      $region30: #{tpu_custom_call.1} parent=5 // pred_check_branch
        %225 = sbr.rel (%p223) target = $region32
      $region31: #{tpu_custom_call.1} parent=5 // pred_region
        // Predicated region
        $region33: #{tpu_custom_call.1} parent=31 // pred_check
          %p226 = pneg %p49
        $region34: #{tpu_custom_call.1} parent=31 // pred_check_branch
          %228 = sbr.rel (%p226) target = $region36
        $region35: #{tpu_custom_call.1} parent=31 // pred_region
          %s229 = smul.u32 2, %s23
          %p230 = scmp.lt.s32.totalorder %s22, 1
          %s231 = scalar_select %p230, %s22, 1
          %p232 = scmp.lt.s32.totalorder %s229, 1
          %s233 = scalar_select %p232, %s229, 1
          %s234 = smul.addr %s231, 8
          %s235 = sadd.s32 %s233, %s234
          %s236 = smul.addr %s235, 8
          %s237 = scalar_lea.vmem %s0, %s236
          %s238 = smul.u32 2, %s23
        $region36: #{tpu_custom_call.1} parent=31 // pred_fallthru
          _
        // Predicated region
        $region37: #{tpu_custom_call.1} parent=31 // pred_check
          %p239 = pneg %p77
        $region38: #{tpu_custom_call.1} parent=31 // pred_check_branch
          %241 = sbr.rel (%p239) target = $region40
        $region39: #{tpu_custom_call.1} parent=31 // pred_region
          %s242 = smul.u32 2, %s23
          %p243 = scmp.lt.s32.totalorder %s22, 1
          %s244 = scalar_select %p243, %s22, 1
          %p245 = scmp.lt.s32.totalorder %s242, 1
          %s246 = scalar_select %p245, %s242, 1
          %s247 = smul.addr %s244, 12
          %s248 = sadd.s32 %s246, %s247
          %s249 = smul.addr %s248, 8
          %s250 = scalar_lea.vmem %s1, %s249
          %s251 = smul.u32 2, %s23
        $region40: #{tpu_custom_call.1} parent=31 // pred_fallthru
          _
      $region32: #{tpu_custom_call.1} parent=5 // pred_fallthru
        _
      %p252 = scmp.le.s32.totalorder 1, %s15
      %p253 = scmp.lt.s32.totalorder %s15, 3
      %p254 = pnand %p252, %p253
      %p255 = pneg %p254
      // Predicated region
      $region41: #{tpu_custom_call.1} parent=5 // pred_check
        _
      $region42: #{tpu_custom_call.1} parent=5 // pred_check_branch
        %257 = sbr.rel (%p254) target = $region44
      $region43: #{tpu_custom_call.1} parent=5 // pred_region
        %s258 = ssub.s32 %s15, 1
        %s259 = smul.u32 2, %s25
        %p260 = scmp.lt.s32.totalorder %s24, 1
        %s261 = scalar_select %p260, %s24, 1
        %p262 = scmp.lt.s32.totalorder %s259, 1
        %s263 = scalar_select %p262, %s259, 1
        %s264 = smul.addr %s261, 8
        %s265 = sadd.s32 %s263, %s264
        %s266 = smul.addr %s265, 8
        %s267 = scalar_lea.vmem %s0, %s266
        %p268 = pneg %p55
        %p269 = pneg %p52
        %s270 = smul.u32 2, %s25
        %p271 = scmp.lt.s32.totalorder %s24, 1
        %s272 = scalar_select %p271, %s24, 1
        %p273 = scmp.lt.s32.totalorder %s270, 1
        %s274 = scalar_select %p273, %s270, 1
        %s275 = smul.addr %s272, 12
        %s276 = sadd.s32 %s274, %s275
        %s277 = smul.addr %s276, 8
        %s278 = scalar_lea.vmem %s1, %s277
        %p279 = pneg %p83
        %p280 = pneg %p80
        %p281 = pneg %p104
        %p282 = pneg %p101
        %p283 = pneg %p125
        %p284 = pneg %p122
        %p285 = pneg %p146
        %p286 = pneg %p143
        %p287 = pneg %p167
        %p288 = pneg %p164
        %p289 = pneg %p195
        %p290 = pneg %p192
        %s291 = sand.u32 %s182, 1
        %s292 = scalar_lea.sflag [#allocation3], %s291
        %s293 = sand.u32 %s182, 1
        %s294 = smul.addr %s293, 64
        %s295 = scalar_lea.vmem [#allocation2], %s294
        %s296 = smul.u32 2, %s25
        %p297 = scmp.lt.s32.totalorder %s24, 1
        %s298 = scalar_select %p297, %s24, 1
        %p299 = scmp.lt.s32.totalorder %s296, 1
        %s300 = scalar_select %p299, %s296, 1
        %s301 = smul.addr %s298, 8
        %s302 = sadd.s32 %s300, %s301
        %s303 = smul.addr %s302, 8
        %s304 = scalar_lea.vmem %s0, %s303
        %s305 = smul.u32 2, %s25
        %s306 = smul.u32 2, %s25
        %p307 = scmp.lt.s32.totalorder %s24, 1
        %s308 = scalar_select %p307, %s24, 1
        %p309 = scmp.lt.s32.totalorder %s306, 1
        %s310 = scalar_select %p309, %s306, 1
        %s311 = smul.addr %s308, 12
        %s312 = sadd.s32 %s310, %s311
        %s313 = smul.addr %s312, 8
        %s314 = scalar_lea.vmem %s1, %s313
        %s315 = smul.u32 2, %s25
        %s316 = smul.u32 2, %s25
        %v317 = vld [vmem:[%s2] sm:$0xff]
        %v318 = vld [vmem:[%s2 + $0x8] sm:$0xff]
        %v319 = vld [vmem:[%s2 + $0x10] sm:$0xff]
        %v320 = vld [vmem:[%s2 + $0x18] sm:$0xff]
        %v321 = vld [vmem:[%s2 + $0x20] sm:$0xff]
        %v322 = vld [vmem:[%s2 + $0x28] sm:$0xff]
        %v323 = vld [vmem:[%s2 + $0x30] sm:$0xff]
        %v324 = vld [vmem:[%s2 + $0x38] sm:$0xff]
        %v325 = vld [vmem:[%s2 + $0x40] sm:$0xff]
        %v326 = vld [vmem:[%s2 + $0x48] sm:$0xff]
        %v327 = vld [vmem:[%s2 + $0x50] sm:$0xff]
        %v328 = vld [vmem:[%s2 + $0x58] sm:$0xff]
        %v329 = vld [vmem:[%s2 + $0x60] sm:$0xff]
        %v330 = vld [vmem:[%s2 + $0x68] sm:$0xff]
        %v331 = vld [vmem:[%s2 + $0x70] sm:$0xff]
        %v332 = vld [vmem:[%s2 + $0x78] sm:$0xff]
        %v333 = vld [vmem:[%s2 + $0x80] sm:$0xff]
        %v334 = vld [vmem:[%s2 + $0x88] sm:$0xff]
        %v335 = vld [vmem:[%s2 + $0x90] sm:$0xff]
        %v336 = vld [vmem:[%s2 + $0x98] sm:$0xff]
        %v337 = vld [vmem:[%s304] sm:$0xff]
        %v338 = vld [vmem:[%s304 + $0x8] sm:$0xff]
        %v339 = vld [vmem:[%s304 + $0x10] sm:$0xff]
        %v340 = vld [vmem:[%s304 + $0x18] sm:$0xff]
        %v341 = vld [vmem:[%s304 + $0x20] sm:$0xff]
        %v342 = vld [vmem:[%s304 + $0x28] sm:$0xff]
        %v343 = vld [vmem:[%s304 + $0x30] sm:$0xff]
        %v344 = vld [vmem:[%s304 + $0x38] sm:$0xff]
        %v345 = vld [vmem:[%s3] sm:$0xff]
        %v346 = vld [vmem:[%s3 + $0x8] sm:$0xff]
        %v347 = vld [vmem:[%s3 + $0x10] sm:$0xff]
        %v348 = vld [vmem:[%s3 + $0x18] sm:$0xff]
        %v349 = vld [vmem:[%s3 + $0x20] sm:$0xff]
        %v350 = vld [vmem:[%s3 + $0x28] sm:$0xff]
        %v351 = vld [vmem:[%s3 + $0x30] sm:$0xff]
        %v352 = vld [vmem:[%s3 + $0x38] sm:$0xff]
        %v353 = vld [vmem:[%s3 + $0x40] sm:$0xff]
        %v354 = vld [vmem:[%s3 + $0x48] sm:$0xff]
        %v355 = vld [vmem:[%s3 + $0x50] sm:$0xff]
        %v356 = vld [vmem:[%s3 + $0x58] sm:$0xff]
        %v357 = vld [vmem:[%s3 + $0x60] sm:$0xff]
        %v358 = vld [vmem:[%s3 + $0x68] sm:$0xff]
        %v359 = vld [vmem:[%s3 + $0x70] sm:$0xff]
        %v360 = vld [vmem:[%s3 + $0x78] sm:$0xff]
        %v361 = vld [vmem:[%s3 + $0x80] sm:$0xff]
        %v362 = vld [vmem:[%s3 + $0x88] sm:$0xff]
        %v363 = vld [vmem:[%s3 + $0x90] sm:$0xff]
        %v364 = vld [vmem:[%s3 + $0x98] sm:$0xff]
        %366 = vset.pattern.permute.xlu0 0
        %367 = vperm.xlu0 %366, %v345
        %v368 = vpop.permute.xlu0 %367
        %371 = vset.pattern.permute.xlu0 0
        %372 = vperm.xlu0 %371, %v346
        %v373 = vpop.permute.xlu0 %372
        %376 = vset.pattern.permute.xlu0 0
        %377 = vperm.xlu0 %376, %v347
        %v378 = vpop.permute.xlu0 %377
        %381 = vset.pattern.permute.xlu0 0
        %382 = vperm.xlu0 %381, %v348
        %v383 = vpop.permute.xlu0 %382
        %386 = vset.pattern.permute.xlu0 0
        %387 = vperm.xlu0 %386, %v349
        %v388 = vpop.permute.xlu0 %387
        %391 = vset.pattern.permute.xlu0 0
        %392 = vperm.xlu0 %391, %v350
        %v393 = vpop.permute.xlu0 %392
        %396 = vset.pattern.permute.xlu0 0
        %397 = vperm.xlu0 %396, %v351
        %v398 = vpop.permute.xlu0 %397
        %401 = vset.pattern.permute.xlu0 0
        %402 = vperm.xlu0 %401, %v352
        %v403 = vpop.permute.xlu0 %402
        %406 = vset.pattern.permute.xlu0 0
        %407 = vperm.xlu0 %406, %v353
        %v408 = vpop.permute.xlu0 %407
        %411 = vset.pattern.permute.xlu0 0
        %412 = vperm.xlu0 %411, %v354
        %v413 = vpop.permute.xlu0 %412
        %416 = vset.pattern.permute.xlu0 0
        %417 = vperm.xlu0 %416, %v355
        %v418 = vpop.permute.xlu0 %417
        %421 = vset.pattern.permute.xlu0 0
        %422 = vperm.xlu0 %421, %v356
        %v423 = vpop.permute.xlu0 %422
        %426 = vset.pattern.permute.xlu0 0
        %427 = vperm.xlu0 %426, %v357
        %v428 = vpop.permute.xlu0 %427
        %431 = vset.pattern.permute.xlu0 0
        %432 = vperm.xlu0 %431, %v358
        %v433 = vpop.permute.xlu0 %432
        %436 = vset.pattern.permute.xlu0 0
        %437 = vperm.xlu0 %436, %v359
        %v438 = vpop.permute.xlu0 %437
        %441 = vset.pattern.permute.xlu0 0
        %442 = vperm.xlu0 %441, %v360
        %v443 = vpop.permute.xlu0 %442
        %446 = vset.pattern.permute.xlu0 0
        %447 = vperm.xlu0 %446, %v361
        %v448 = vpop.permute.xlu0 %447
        %451 = vset.pattern.permute.xlu0 0
        %452 = vperm.xlu0 %451, %v362
        %v453 = vpop.permute.xlu0 %452
        %456 = vset.pattern.permute.xlu0 0
        %457 = vperm.xlu0 %456, %v363
        %v458 = vpop.permute.xlu0 %457
        %461 = vset.pattern.permute.xlu0 0
        %462 = vperm.xlu0 %461, %v364
        %v463 = vpop.permute.xlu0 %462
        %vm465 = vcmask 261120
        %v467 = vsel %vm465, %v317, 0
        %v470 = vsel %vm465, %v318, 0
        %v473 = vsel %vm465, %v319, 0
        %v476 = vsel %vm465, %v320, 0
        %v479 = vsel %vm465, %v321, 0
        %v482 = vsel %vm465, %v322, 0
        %v485 = vsel %vm465, %v323, 0
        %v488 = vsel %vm465, %v324, 0
        %v491 = vsel %vm465, %v325, 0
        %v494 = vsel %vm465, %v326, 0
        %v497 = vsel %vm465, %v327, 0
        %v500 = vsel %vm465, %v328, 0
        %v503 = vsel %vm465, %v329, 0
        %v506 = vsel %vm465, %v330, 0
        %v509 = vsel %vm465, %v331, 0
        %v512 = vsel %vm465, %v332, 0
        %v515 = vsel %vm465, %v333, 0
        %v518 = vsel %vm465, %v334, 0
        %v521 = vsel %vm465, %v335, 0
        %v524 = vsel %vm465, %v336, 0
        %526 = vmatprep.subr.mxu0 %v338
        %527 = vmatpush1.msra.mxu0 %v337
        %528 = vmatprep.subr.mxu0 %v340
        %529 = vmatpush1.msra.mxu0 %v339
        %530 = vmatprep.subr.mxu0 %v342
        %531 = vmatpush1.msra.mxu0 %v341
        %532 = vmatprep.subr.mxu0 %v344
        %533 = vmatpush1.msra.mxu0 %v343
        %534 = vmatprep.subr.mxu0 0.0
        %535 = vmatpush1.msra.mxu0 0.0
        %536 = vmatprep.subr.mxu0 0.0
        %537 = vmatpush1.msra.mxu0 0.0
        %538 = vmatprep.subr.mxu0 0.0
        %539 = vmatpush1.msra.mxu0 0.0
        %540 = vmatprep.subr.mxu0 0.0
        %541 = vmatpush1.msra.mxu0 0.0
        %542 = vmatprep.subr.mxu0 0.0
        %543 = vmatpush1.msra.mxu0 0.0
        %544 = vmatprep.subr.mxu0 0.0
        %545 = vmatpush1.msra.mxu0 0.0
        %546 = vmatprep.subr.mxu0 0.0
        %547 = vmatpush1.msra.mxu0 0.0
        %548 = vmatprep.subr.mxu0 0.0
        %549 = vmatpush1.msra.mxu0 0.0
        %550 = vmatprep.subr.mxu0 0.0
        %551 = vmatpush1.msra.mxu0 0.0
        %552 = vmatprep.subr.mxu0 0.0
        %553 = vmatpush1.msra.mxu0 0.0
        %554 = vmatprep.subr.mxu0 0.0
        %555 = vmatpush1.msra.mxu0 0.0
        %556 = vmatprep.subr.mxu0 0.0
        %557 = vmatpush1.msra.mxu0 0.0
        %558 = vmatprep.subr.mxu0 0.0
        %559 = vmatpush1.msra.mxu0 0.0
        %560 = vmatprep.subr.mxu0 0.0
        %561 = vmatpush1.msra.mxu0 0.0
        %562 = vmatprep.subr.mxu0 0.0
        %563 = vmatpush1.msra.mxu0 0.0
        %564 = vmatprep.subr.mxu0 0.0
        %565 = vmatpush1.msra.mxu0 0.0
        %566 = vmatprep.subr.mxu0 0.0
        %567 = vmatpush1.msra.mxu0 0.0
        %568 = vmatprep.subr.mxu0 0.0
        %569 = vmatpush1.msra.mxu0 0.0
        %570 = vmatprep.subr.mxu0 0.0
        %571 = vmatpush1.msra.mxu0 0.0
        %572 = vmatprep.subr.mxu0 0.0
        %573 = vmatpush1.msra.mxu0 0.0
        %574 = vmatprep.subr.mxu0 0.0
        %575 = vmatpush1.msra.mxu0 0.0
        %576 = vmatprep.subr.mxu0 0.0
        %577 = vmatpush1.msra.mxu0 0.0
        %578 = vmatprep.subr.mxu0 0.0
        %579 = vmatpush1.msra.mxu0 0.0
        %580 = vmatprep.subr.mxu0 0.0
        %581 = vmatpush1.msra.mxu0 0.0
        %582 = vmatprep.subr.mxu0 0.0
        %583 = vmatpush1.msra.mxu0 0.0
        %584 = vmatprep.subr.mxu0 0.0
        %585 = vmatpush1.msra.mxu0 0.0
        %586 = vmatprep.subr.mxu0 0.0
        %587 = vmatpush1.msra.mxu0 0.0
        %588 = vmatprep.subr.mxu0 0.0
        %589 = vmatpush1.msra.mxu0 0.0
        %590 = vmatprep.mubr.f32.mxu0 0.0
        %591 = vmatmul.mubr.f32.gmra.mrb[0].mxu0 %v467
        %v592 = vpop.f32.mrb[0].mxu0
        %v593 = vadd.f32 %v368, %v592
        %v594 = vpop.f32.mrb[0].mxu0
        %v595 = vadd.f32 %v368, %v594
        %596 = vmatprep.mubr.f32.mxu0 0.0
        %597 = vmatmul.mubr.f32.gmra.mrb[0].mxu0 %v470
        %v598 = vpop.f32.mrb[0].mxu0
        %v599 = vadd.f32 %v373, %v598
        %v600 = vpop.f32.mrb[0].mxu0
        %v601 = vadd.f32 %v373, %v600
        %602 = vmatprep.mubr.f32.mxu0 0.0
        %603 = vmatmul.mubr.f32.gmra.mrb[0].mxu0 %v473
        %v604 = vpop.f32.mrb[0].mxu0
        %v605 = vadd.f32 %v378, %v604
        %v606 = vpop.f32.mrb[0].mxu0
        %v607 = vadd.f32 %v378, %v606
        %608 = vmatprep.mubr.f32.mxu0 0.0
        %609 = vmatmul.mubr.f32.gmra.mrb[0].mxu0 %v476
        %v610 = vpop.f32.mrb[0].mxu0
        %v611 = vadd.f32 %v383, %v610
        %v612 = vpop.f32.mrb[0].mxu0
        %v613 = vadd.f32 %v383, %v612
        %614 = vmatprep.mubr.f32.mxu0 0.0
        %615 = vmatmul.mubr.f32.gmra.mrb[0].mxu0 %v479
        %v616 = vpop.f32.mrb[0].mxu0
        %v617 = vadd.f32 %v388, %v616
        %v618 = vpop.f32.mrb[0].mxu0
        %v619 = vadd.f32 %v388, %v618
        %620 = vmatprep.mubr.f32.mxu0 0.0
        %621 = vmatmul.mubr.f32.gmra.mrb[0].mxu0 %v482
        %v622 = vpop.f32.mrb[0].mxu0
        %v623 = vadd.f32 %v393, %v622
        %v624 = vpop.f32.mrb[0].mxu0
        %v625 = vadd.f32 %v393, %v624
        %626 = vmatprep.mubr.f32.mxu0 0.0
        %627 = vmatmul.mubr.f32.gmra.mrb[0].mxu0 %v485
        %v628 = vpop.f32.mrb[0].mxu0
        %v629 = vadd.f32 %v398, %v628
        %v630 = vpop.f32.mrb[0].mxu0
        %v631 = vadd.f32 %v398, %v630
        %632 = vmatprep.mubr.f32.mxu0 0.0
        %633 = vmatmul.mubr.f32.gmra.mrb[0].mxu0 %v488
        %v634 = vpop.f32.mrb[0].mxu0
        %v635 = vadd.f32 %v403, %v634
        %v636 = vpop.f32.mrb[0].mxu0
        %v637 = vadd.f32 %v403, %v636
        %638 = vmatprep.mubr.f32.mxu0 0.0
        %639 = vmatmul.mubr.f32.gmra.mrb[0].mxu0 %v491
        %v640 = vpop.f32.mrb[0].mxu0
        %v641 = vadd.f32 %v408, %v640
        %v642 = vpop.f32.mrb[0].mxu0
        %v643 = vadd.f32 %v408, %v642
        %644 = vmatprep.mubr.f32.mxu0 0.0
        %645 = vmatmul.mubr.f32.gmra.mrb[0].mxu0 %v494
        %v646 = vpop.f32.mrb[0].mxu0
        %v647 = vadd.f32 %v413, %v646
        %v648 = vpop.f32.mrb[0].mxu0
        %v649 = vadd.f32 %v413, %v648
        %650 = vmatprep.mubr.f32.mxu0 0.0
        %651 = vmatmul.mubr.f32.gmra.mrb[0].mxu0 %v497
        %v652 = vpop.f32.mrb[0].mxu0
        %v653 = vadd.f32 %v418, %v652
        %v654 = vpop.f32.mrb[0].mxu0
        %v655 = vadd.f32 %v418, %v654
        %656 = vmatprep.mubr.f32.mxu0 0.0
        %657 = vmatmul.mubr.f32.gmra.mrb[0].mxu0 %v500
        %v658 = vpop.f32.mrb[0].mxu0
        %v659 = vadd.f32 %v423, %v658
        %v660 = vpop.f32.mrb[0].mxu0
        %v661 = vadd.f32 %v423, %v660
        %662 = vmatprep.mubr.f32.mxu0 0.0
        %663 = vmatmul.mubr.f32.gmra.mrb[0].mxu0 %v503
        %v664 = vpop.f32.mrb[0].mxu0
        %v665 = vadd.f32 %v428, %v664
        %v666 = vpop.f32.mrb[0].mxu0
        %v667 = vadd.f32 %v428, %v666
        %668 = vmatprep.mubr.f32.mxu0 0.0
        %669 = vmatmul.mubr.f32.gmra.mrb[0].mxu0 %v506
        %v670 = vpop.f32.mrb[0].mxu0
        %v671 = vadd.f32 %v433, %v670
        %v672 = vpop.f32.mrb[0].mxu0
        %v673 = vadd.f32 %v433, %v672
        %674 = vmatprep.mubr.f32.mxu0 0.0
        %675 = vmatmul.mubr.f32.gmra.mrb[0].mxu0 %v509
        %v676 = vpop.f32.mrb[0].mxu0
        %v677 = vadd.f32 %v438, %v676
        %v678 = vpop.f32.mrb[0].mxu0
        %v679 = vadd.f32 %v438, %v678
        %680 = vmatprep.mubr.f32.mxu0 0.0
        %681 = vmatmul.mubr.f32.gmra.mrb[0].mxu0 %v512
        %v682 = vpop.f32.mrb[0].mxu0
        %v683 = vadd.f32 %v443, %v682
        %v684 = vpop.f32.mrb[0].mxu0
        %v685 = vadd.f32 %v443, %v684
        %686 = vmatprep.mubr.f32.mxu0 0.0
        %687 = vmatmul.mubr.f32.gmra.mrb[0].mxu0 %v515
        %v688 = vpop.f32.mrb[0].mxu0
        %v689 = vadd.f32 %v448, %v688
        %v690 = vpop.f32.mrb[0].mxu0
        %v691 = vadd.f32 %v448, %v690
        %692 = vmatprep.mubr.f32.mxu0 0.0
        %693 = vmatmul.mubr.f32.gmra.mrb[0].mxu0 %v518
        %v694 = vpop.f32.mrb[0].mxu0
        %v695 = vadd.f32 %v453, %v694
        %v696 = vpop.f32.mrb[0].mxu0
        %v697 = vadd.f32 %v453, %v696
        %698 = vmatprep.mubr.f32.mxu0 0.0
        %699 = vmatmul.mubr.f32.gmra.mrb[0].mxu0 %v521
        %v700 = vpop.f32.mrb[0].mxu0
        %v701 = vadd.f32 %v458, %v700
        %v702 = vpop.f32.mrb[0].mxu0
        %v703 = vadd.f32 %v458, %v702
        %704 = vmatprep.mubr.f32.mxu0 0.0
        %705 = vmatmul.mubr.f32.gmra.mrb[0].mxu0 %v524
        %v706 = vpop.f32.mrb[0].mxu0
        %v707 = vadd.f32 %v463, %v706
        %v708 = vpop.f32.mrb[0].mxu0
        %v709 = vadd.f32 %v463, %v708
        %710 = vdwg.mxu0
        %v711 = vtanh.pop %v593
        %v712 = vtanh.pop %v595
        %v713 = vtanh.pop %v599
        %v714 = vtanh.pop %v601
        %v715 = vtanh.pop %v605
        %v716 = vtanh.pop %v607
        %v717 = vtanh.pop %v611
        %v718 = vtanh.pop %v613
        %v719 = vtanh.pop %v617
        %v720 = vtanh.pop %v619
        %v721 = vtanh.pop %v623
        %v722 = vtanh.pop %v625
        %v723 = vtanh.pop %v629
        %v724 = vtanh.pop %v631
        %v725 = vtanh.pop %v635
        %v726 = vtanh.pop %v637
        %v727 = vtanh.pop %v641
        %v728 = vtanh.pop %v643
        %v729 = vtanh.pop %v647
        %v730 = vtanh.pop %v649
        %v731 = vtanh.pop %v653
        %v732 = vtanh.pop %v655
        %v733 = vtanh.pop %v659
        %v734 = vtanh.pop %v661
        %v735 = vtanh.pop %v665
        %v736 = vtanh.pop %v667
        %v737 = vtanh.pop %v671
        %v738 = vtanh.pop %v673
        %v739 = vtanh.pop %v677
        %v740 = vtanh.pop %v679
        %v741 = vtanh.pop %v683
        %v742 = vtanh.pop %v685
        %v743 = vtanh.pop %v689
        %v744 = vtanh.pop %v691
        %v745 = vtanh.pop %v695
        %v746 = vtanh.pop %v697
        %v747 = vtanh.pop %v701
        %v748 = vtanh.pop %v703
        %v749 = vtanh.pop %v707
        %v750 = vtanh.pop %v709
        %v751 = vld [vmem:[%s4] sm:$0xff]
        %v752 = vld [vmem:[%s4 + $0x8] sm:$0xff]
        %v753 = vld [vmem:[%s4 + $0x10] sm:$0xff]
        %v754 = vld [vmem:[%s4 + $0x18] sm:$0xff]
        %v755 = vld [vmem:[%s4 + $0x20] sm:$0xff]
        %v756 = vld [vmem:[%s4 + $0x28] sm:$0xff]
        %v757 = vld [vmem:[%s4 + $0x30] sm:$0xff]
        %v758 = vld [vmem:[%s4 + $0x38] sm:$0xff]
        %v759 = vld [vmem:[%s4 + $0x40] sm:$0xff]
        %v760 = vld [vmem:[%s4 + $0x48] sm:$0xff]
        %v761 = vld [vmem:[%s4 + $0x50] sm:$0xff]
        %v762 = vld [vmem:[%s4 + $0x58] sm:$0xff]
        %v763 = vld [vmem:[%s4 + $0x60] sm:$0xff]
        %v764 = vld [vmem:[%s4 + $0x68] sm:$0xff]
        %v765 = vld [vmem:[%s4 + $0x70] sm:$0xff]
        %v766 = vld [vmem:[%s4 + $0x78] sm:$0xff]
        %v767 = vld [vmem:[%s4 + $0x80] sm:$0xff]
        %v768 = vld [vmem:[%s4 + $0x88] sm:$0xff]
        %v769 = vld [vmem:[%s4 + $0x90] sm:$0xff]
        %v770 = vld [vmem:[%s4 + $0x98] sm:$0xff]
        %v771 = vld [vmem:[%s314] sm:$0xff]
        %v772 = vld [vmem:[%s314 + $0x8] sm:$0xff]
        %v773 = vld [vmem:[%s314 + $0x10] sm:$0xff]
        %v774 = vld [vmem:[%s314 + $0x18] sm:$0xff]
        %v775 = vld [vmem:[%s314 + $0x20] sm:$0xff]
        %v776 = vld [vmem:[%s314 + $0x28] sm:$0xff]
        %v777 = vld [vmem:[%s314 + $0x30] sm:$0xff]
        %v778 = vld [vmem:[%s314 + $0x38] sm:$0xff]
        %v779 = vld [vmem:[%s314 + $0x40] sm:$0xff]
        %v780 = vld [vmem:[%s314 + $0x48] sm:$0xff]
        %v781 = vld [vmem:[%s314 + $0x50] sm:$0xff]
        %v782 = vld [vmem:[%s314 + $0x58] sm:$0xff]
        %v783 = vld [vmem:[%s5] sm:$0xff]
        %v784 = vld [vmem:[%s5 + $0x8] sm:$0xff]
        %v785 = vld [vmem:[%s5 + $0x10] sm:$0xff]
        %v786 = vld [vmem:[%s5 + $0x18] sm:$0xff]
        %v787 = vld [vmem:[%s5 + $0x20] sm:$0xff]
        %v788 = vld [vmem:[%s5 + $0x28] sm:$0xff]
        %v789 = vld [vmem:[%s5 + $0x30] sm:$0xff]
        %v790 = vld [vmem:[%s5 + $0x38] sm:$0xff]
        %v791 = vld [vmem:[%s5 + $0x40] sm:$0xff]
        %v792 = vld [vmem:[%s5 + $0x48] sm:$0xff]
        %v793 = vld [vmem:[%s5 + $0x50] sm:$0xff]
        %v794 = vld [vmem:[%s5 + $0x58] sm:$0xff]
        %v795 = vld [vmem:[%s5 + $0x60] sm:$0xff]
        %v796 = vld [vmem:[%s5 + $0x68] sm:$0xff]
        %v797 = vld [vmem:[%s5 + $0x70] sm:$0xff]
        %v798 = vld [vmem:[%s5 + $0x78] sm:$0xff]
        %v799 = vld [vmem:[%s5 + $0x80] sm:$0xff]
        %v800 = vld [vmem:[%s5 + $0x88] sm:$0xff]
        %v801 = vld [vmem:[%s5 + $0x90] sm:$0xff]
        %v802 = vld [vmem:[%s5 + $0x98] sm:$0xff]
        %804 = vset.pattern.permute.xlu0 0
        %805 = vperm.xlu0 %804, %v783
        %v806 = vpop.permute.xlu0 %805
        %809 = vset.pattern.permute.xlu0 0
        %810 = vperm.xlu0 %809, %v784
        %v811 = vpop.permute.xlu0 %810
        %814 = vset.pattern.permute.xlu0 0
        %815 = vperm.xlu0 %814, %v785
        %v816 = vpop.permute.xlu0 %815
        %819 = vset.pattern.permute.xlu0 0
        %820 = vperm.xlu0 %819, %v786
        %v821 = vpop.permute.xlu0 %820
        %824 = vset.pattern.permute.xlu0 0
        %825 = vperm.xlu0 %824, %v787
        %v826 = vpop.permute.xlu0 %825
        %829 = vset.pattern.permute.xlu0 0
        %830 = vperm.xlu0 %829, %v788
        %v831 = vpop.permute.xlu0 %830
        %834 = vset.pattern.permute.xlu0 0
        %835 = vperm.xlu0 %834, %v789
        %v836 = vpop.permute.xlu0 %835
        %839 = vset.pattern.permute.xlu0 0
        %840 = vperm.xlu0 %839, %v790
        %v841 = vpop.permute.xlu0 %840
        %844 = vset.pattern.permute.xlu0 0
        %845 = vperm.xlu0 %844, %v791
        %v846 = vpop.permute.xlu0 %845
        %849 = vset.pattern.permute.xlu0 0
        %850 = vperm.xlu0 %849, %v792
        %v851 = vpop.permute.xlu0 %850
        %854 = vset.pattern.permute.xlu0 0
        %855 = vperm.xlu0 %854, %v793
        %v856 = vpop.permute.xlu0 %855
        %859 = vset.pattern.permute.xlu0 0
        %860 = vperm.xlu0 %859, %v794
        %v861 = vpop.permute.xlu0 %860
        %864 = vset.pattern.permute.xlu0 0
        %865 = vperm.xlu0 %864, %v795
        %v866 = vpop.permute.xlu0 %865
        %869 = vset.pattern.permute.xlu0 0
        %870 = vperm.xlu0 %869, %v796
        %v871 = vpop.permute.xlu0 %870
        %874 = vset.pattern.permute.xlu0 0
        %875 = vperm.xlu0 %874, %v797
        %v876 = vpop.permute.xlu0 %875
        %879 = vset.pattern.permute.xlu0 0
        %880 = vperm.xlu0 %879, %v798
        %v881 = vpop.permute.xlu0 %880
        %884 = vset.pattern.permute.xlu0 0
        %885 = vperm.xlu0 %884, %v799
        %v886 = vpop.permute.xlu0 %885
        %889 = vset.pattern.permute.xlu0 0
        %890 = vperm.xlu0 %889, %v800
        %v891 = vpop.permute.xlu0 %890
        %894 = vset.pattern.permute.xlu0 0
        %895 = vperm.xlu0 %894, %v801
        %v896 = vpop.permute.xlu0 %895
        %899 = vset.pattern.permute.xlu0 0
        %900 = vperm.xlu0 %899, %v802
        %v901 = vpop.permute.xlu0 %900
        %vm903 = vcmask 392192
        %v905 = vsel %vm903, %v751, 0
        %v908 = vsel %vm903, %v752, 0
        %v911 = vsel %vm903, %v753, 0
        %v914 = vsel %vm903, %v754, 0
        %v917 = vsel %vm903, %v755, 0
        %v920 = vsel %vm903, %v756, 0
        %v923 = vsel %vm903, %v757, 0
        %v926 = vsel %vm903, %v758, 0
        %v929 = vsel %vm903, %v759, 0
        %v932 = vsel %vm903, %v760, 0
        %v935 = vsel %vm903, %v761, 0
        %v938 = vsel %vm903, %v762, 0
        %v941 = vsel %vm903, %v763, 0
        %v944 = vsel %vm903, %v764, 0
        %v947 = vsel %vm903, %v765, 0
        %v950 = vsel %vm903, %v766, 0
        %v953 = vsel %vm903, %v767, 0
        %v956 = vsel %vm903, %v768, 0
        %v959 = vsel %vm903, %v769, 0
        %v962 = vsel %vm903, %v770, 0
        %964 = vmatprep.subr.mxu0 %v772
        %965 = vmatpush1.msra.mxu0 %v771
        %966 = vmatprep.subr.mxu0 %v774
        %967 = vmatpush1.msra.mxu0 %v773
        %968 = vmatprep.subr.mxu0 %v776
        %969 = vmatpush1.msra.mxu0 %v775
        %970 = vmatprep.subr.mxu0 %v778
        %971 = vmatpush1.msra.mxu0 %v777
        %972 = vmatprep.subr.mxu0 %v780
        %973 = vmatpush1.msra.mxu0 %v779
        %974 = vmatprep.subr.mxu0 %v782
        %975 = vmatpush1.msra.mxu0 %v781
        %976 = vmatprep.subr.mxu0 0.0
        %977 = vmatpush1.msra.mxu0 0.0
        %978 = vmatprep.subr.mxu0 0.0
        %979 = vmatpush1.msra.mxu0 0.0
        %980 = vmatprep.subr.mxu0 0.0
        %981 = vmatpush1.msra.mxu0 0.0
        %982 = vmatprep.subr.mxu0 0.0
        %983 = vmatpush1.msra.mxu0 0.0
        %984 = vmatprep.subr.mxu0 0.0
        %985 = vmatpush1.msra.mxu0 0.0
        %986 = vmatprep.subr.mxu0 0.0
        %987 = vmatpush1.msra.mxu0 0.0
        %988 = vmatprep.subr.mxu0 0.0
        %989 = vmatpush1.msra.mxu0 0.0
        %990 = vmatprep.subr.mxu0 0.0
        %991 = vmatpush1.msra.mxu0 0.0
        %992 = vmatprep.subr.mxu0 0.0
        %993 = vmatpush1.msra.mxu0 0.0
        %994 = vmatprep.subr.mxu0 0.0
        %995 = vmatpush1.msra.mxu0 0.0
        %996 = vmatprep.subr.mxu0 0.0
        %997 = vmatpush1.msra.mxu0 0.0
        %998 = vmatprep.subr.mxu0 0.0
        %999 = vmatpush1.msra.mxu0 0.0
        %1000 = vmatprep.subr.mxu0 0.0
        %1001 = vmatpush1.msra.mxu0 0.0
        %1002 = vmatprep.subr.mxu0 0.0
        %1003 = vmatpush1.msra.mxu0 0.0
        %1004 = vmatprep.subr.mxu0 0.0
        %1005 = vmatpush1.msra.mxu0 0.0
        %1006 = vmatprep.subr.mxu0 0.0
        %1007 = vmatpush1.msra.mxu0 0.0
        %1008 = vmatprep.subr.mxu0 0.0
        %1009 = vmatpush1.msra.mxu0 0.0
        %1010 = vmatprep.subr.mxu0 0.0
        %1011 = vmatpush1.msra.mxu0 0.0
        %1012 = vmatprep.subr.mxu0 0.0
        %1013 = vmatpush1.msra.mxu0 0.0
        %1014 = vmatprep.subr.mxu0 0.0
        %1015 = vmatpush1.msra.mxu0 0.0
        %1016 = vmatprep.subr.mxu0 0.0
        %1017 = vmatpush1.msra.mxu0 0.0
        %1018 = vmatprep.subr.mxu0 0.0
        %1019 = vmatpush1.msra.mxu0 0.0
        %1020 = vmatprep.subr.mxu0 0.0
        %1021 = vmatpush1.msra.mxu0 0.0
        %1022 = vmatprep.subr.mxu0 0.0
        %1023 = vmatpush1.msra.mxu0 0.0
        %1024 = vmatprep.subr.mxu0 0.0
        %1025 = vmatpush1.msra.mxu0 0.0
        %1026 = vmatprep.subr.mxu0 0.0
        %1027 = vmatpush1.msra.mxu0 0.0
        %1028 = vmatprep.mubr.f32.mxu0 0.0
        %1029 = vmatmul.mubr.f32.gmra.mrb[0].mxu0 %v905
        %v1030 = vpop.f32.mrb[0].mxu0
        %v1031 = vadd.f32 %v806, %v1030
        %v1032 = vpop.f32.mrb[0].mxu0
        %v1033 = vadd.f32 %v806, %v1032
        %1034 = vmatprep.mubr.f32.mxu0 0.0
        %1035 = vmatmul.mubr.f32.gmra.mrb[0].mxu0 %v908
        %v1036 = vpop.f32.mrb[0].mxu0
        %v1037 = vadd.f32 %v811, %v1036
        %v1038 = vpop.f32.mrb[0].mxu0
        %v1039 = vadd.f32 %v811, %v1038
        %1040 = vmatprep.mubr.f32.mxu0 0.0
        %1041 = vmatmul.mubr.f32.gmra.mrb[0].mxu0 %v911
        %v1042 = vpop.f32.mrb[0].mxu0
        %v1043 = vadd.f32 %v816, %v1042
        %v1044 = vpop.f32.mrb[0].mxu0
        %v1045 = vadd.f32 %v816, %v1044
        %1046 = vmatprep.mubr.f32.mxu0 0.0
        %1047 = vmatmul.mubr.f32.gmra.mrb[0].mxu0 %v914
        %v1048 = vpop.f32.mrb[0].mxu0
        %v1049 = vadd.f32 %v821, %v1048
        %v1050 = vpop.f32.mrb[0].mxu0
        %v1051 = vadd.f32 %v821, %v1050
        %1052 = vmatprep.mubr.f32.mxu0 0.0
        %1053 = vmatmul.mubr.f32.gmra.mrb[0].mxu0 %v917
        %v1054 = vpop.f32.mrb[0].mxu0
        %v1055 = vadd.f32 %v826, %v1054
        %v1056 = vpop.f32.mrb[0].mxu0
        %v1057 = vadd.f32 %v826, %v1056
        %1058 = vmatprep.mubr.f32.mxu0 0.0
        %1059 = vmatmul.mubr.f32.gmra.mrb[0].mxu0 %v920
        %v1060 = vpop.f32.mrb[0].mxu0
        %v1061 = vadd.f32 %v831, %v1060
        %v1062 = vpop.f32.mrb[0].mxu0
        %v1063 = vadd.f32 %v831, %v1062
        %1064 = vmatprep.mubr.f32.mxu0 0.0
        %1065 = vmatmul.mubr.f32.gmra.mrb[0].mxu0 %v923
        %v1066 = vpop.f32.mrb[0].mxu0
        %v1067 = vadd.f32 %v836, %v1066
        %v1068 = vpop.f32.mrb[0].mxu0
        %v1069 = vadd.f32 %v836, %v1068
        %1070 = vmatprep.mubr.f32.mxu0 0.0
        %1071 = vmatmul.mubr.f32.gmra.mrb[0].mxu0 %v926
        %v1072 = vpop.f32.mrb[0].mxu0
        %v1073 = vadd.f32 %v841, %v1072
        %v1074 = vpop.f32.mrb[0].mxu0
        %v1075 = vadd.f32 %v841, %v1074
        %1076 = vmatprep.mubr.f32.mxu0 0.0
        %1077 = vmatmul.mubr.f32.gmra.mrb[0].mxu0 %v929
        %v1078 = vpop.f32.mrb[0].mxu0
        %v1079 = vadd.f32 %v846, %v1078
        %v1080 = vpop.f32.mrb[0].mxu0
        %v1081 = vadd.f32 %v846, %v1080
        %1082 = vmatprep.mubr.f32.mxu0 0.0
        %1083 = vmatmul.mubr.f32.gmra.mrb[0].mxu0 %v932
        %v1084 = vpop.f32.mrb[0].mxu0
        %v1085 = vadd.f32 %v851, %v1084
        %v1086 = vpop.f32.mrb[0].mxu0
        %v1087 = vadd.f32 %v851, %v1086
        %1088 = vmatprep.mubr.f32.mxu0 0.0
        %1089 = vmatmul.mubr.f32.gmra.mrb[0].mxu0 %v935
        %v1090 = vpop.f32.mrb[0].mxu0
        %v1091 = vadd.f32 %v856, %v1090
        %v1092 = vpop.f32.mrb[0].mxu0
        %v1093 = vadd.f32 %v856, %v1092
        %1094 = vmatprep.mubr.f32.mxu0 0.0
        %1095 = vmatmul.mubr.f32.gmra.mrb[0].mxu0 %v938
        %v1096 = vpop.f32.mrb[0].mxu0
        %v1097 = vadd.f32 %v861, %v1096
        %v1098 = vpop.f32.mrb[0].mxu0
        %v1099 = vadd.f32 %v861, %v1098
        %1100 = vmatprep.mubr.f32.mxu0 0.0
        %1101 = vmatmul.mubr.f32.gmra.mrb[0].mxu0 %v941
        %v1102 = vpop.f32.mrb[0].mxu0
        %v1103 = vadd.f32 %v866, %v1102
        %v1104 = vpop.f32.mrb[0].mxu0
        %v1105 = vadd.f32 %v866, %v1104
        %1106 = vmatprep.mubr.f32.mxu0 0.0
        %1107 = vmatmul.mubr.f32.gmra.mrb[0].mxu0 %v944
        %v1108 = vpop.f32.mrb[0].mxu0
        %v1109 = vadd.f32 %v871, %v1108
        %v1110 = vpop.f32.mrb[0].mxu0
        %v1111 = vadd.f32 %v871, %v1110
        %1112 = vmatprep.mubr.f32.mxu0 0.0
        %1113 = vmatmul.mubr.f32.gmra.mrb[0].mxu0 %v947
        %v1114 = vpop.f32.mrb[0].mxu0
        %v1115 = vadd.f32 %v876, %v1114
        %v1116 = vpop.f32.mrb[0].mxu0
        %v1117 = vadd.f32 %v876, %v1116
        %1118 = vmatprep.mubr.f32.mxu0 0.0
        %1119 = vmatmul.mubr.f32.gmra.mrb[0].mxu0 %v950
        %v1120 = vpop.f32.mrb[0].mxu0
        %v1121 = vadd.f32 %v881, %v1120
        %v1122 = vpop.f32.mrb[0].mxu0
        %v1123 = vadd.f32 %v881, %v1122
        %1124 = vmatprep.mubr.f32.mxu0 0.0
        %1125 = vmatmul.mubr.f32.gmra.mrb[0].mxu0 %v953
        %v1126 = vpop.f32.mrb[0].mxu0
        %v1127 = vadd.f32 %v886, %v1126
        %v1128 = vpop.f32.mrb[0].mxu0
        %v1129 = vadd.f32 %v886, %v1128
        %1130 = vmatprep.mubr.f32.mxu0 0.0
        %1131 = vmatmul.mubr.f32.gmra.mrb[0].mxu0 %v956
        %v1132 = vpop.f32.mrb[0].mxu0
        %v1133 = vadd.f32 %v891, %v1132
        %v1134 = vpop.f32.mrb[0].mxu0
        %v1135 = vadd.f32 %v891, %v1134
        %1136 = vmatprep.mubr.f32.mxu0 0.0
        %1137 = vmatmul.mubr.f32.gmra.mrb[0].mxu0 %v959
        %v1138 = vpop.f32.mrb[0].mxu0
        %v1139 = vadd.f32 %v896, %v1138
        %v1140 = vpop.f32.mrb[0].mxu0
        %v1141 = vadd.f32 %v896, %v1140
        %1142 = vmatprep.mubr.f32.mxu0 0.0
        %1143 = vmatmul.mubr.f32.gmra.mrb[0].mxu0 %v962
        %v1144 = vpop.f32.mrb[0].mxu0
        %v1145 = vadd.f32 %v901, %v1144
        %v1146 = vpop.f32.mrb[0].mxu0
        %v1147 = vadd.f32 %v901, %v1146
        %1148 = vdwg.mxu0
        %v1149 = vtanh.pop %v1031
        %v1150 = vtanh.pop %v1033
        %v1151 = vtanh.pop %v1037
        %v1152 = vtanh.pop %v1039
        %v1153 = vtanh.pop %v1043
        %v1154 = vtanh.pop %v1045
        %v1155 = vtanh.pop %v1049
        %v1156 = vtanh.pop %v1051
        %v1157 = vtanh.pop %v1055
        %v1158 = vtanh.pop %v1057
        %v1159 = vtanh.pop %v1061
        %v1160 = vtanh.pop %v1063
        %v1161 = vtanh.pop %v1067
        %v1162 = vtanh.pop %v1069
        %v1163 = vtanh.pop %v1073
        %v1164 = vtanh.pop %v1075
        %v1165 = vtanh.pop %v1079
        %v1166 = vtanh.pop %v1081
        %v1167 = vtanh.pop %v1085
        %v1168 = vtanh.pop %v1087
        %v1169 = vtanh.pop %v1091
        %v1170 = vtanh.pop %v1093
        %v1171 = vtanh.pop %v1097
        %v1172 = vtanh.pop %v1099
        %v1173 = vtanh.pop %v1103
        %v1174 = vtanh.pop %v1105
        %v1175 = vtanh.pop %v1109
        %v1176 = vtanh.pop %v1111
        %v1177 = vtanh.pop %v1115
        %v1178 = vtanh.pop %v1117
        %v1179 = vtanh.pop %v1121
        %v1180 = vtanh.pop %v1123
        %v1181 = vtanh.pop %v1127
        %v1182 = vtanh.pop %v1129
        %v1183 = vtanh.pop %v1133
        %v1184 = vtanh.pop %v1135
        %v1185 = vtanh.pop %v1139
        %v1186 = vtanh.pop %v1141
        %v1187 = vtanh.pop %v1145
        %v1188 = vtanh.pop %v1147
        %v1189 = vmul.f32 %v711, %v1149
        %v1190 = vmul.f32 %v712, %v1150
        %v1191 = vmul.f32 %v713, %v1151
        %v1192 = vmul.f32 %v714, %v1152
        %v1193 = vmul.f32 %v715, %v1153
        %v1194 = vmul.f32 %v716, %v1154
        %v1195 = vmul.f32 %v717, %v1155
        %v1196 = vmul.f32 %v718, %v1156
        %v1197 = vmul.f32 %v719, %v1157
        %v1198 = vmul.f32 %v720, %v1158
        %v1199 = vmul.f32 %v721, %v1159
        %v1200 = vmul.f32 %v722, %v1160
        %v1201 = vmul.f32 %v723, %v1161
        %v1202 = vmul.f32 %v724, %v1162
        %v1203 = vmul.f32 %v725, %v1163
        %v1204 = vmul.f32 %v726, %v1164
        %v1205 = vmul.f32 %v727, %v1165
        %v1206 = vmul.f32 %v728, %v1166
        %v1207 = vmul.f32 %v729, %v1167
        %v1208 = vmul.f32 %v730, %v1168
        %v1209 = vmul.f32 %v731, %v1169
        %v1210 = vmul.f32 %v732, %v1170
        %v1211 = vmul.f32 %v733, %v1171
        %v1212 = vmul.f32 %v734, %v1172
        %v1213 = vmul.f32 %v735, %v1173
        %v1214 = vmul.f32 %v736, %v1174
        %v1215 = vmul.f32 %v737, %v1175
        %v1216 = vmul.f32 %v738, %v1176
        %v1217 = vmul.f32 %v739, %v1177
        %v1218 = vmul.f32 %v740, %v1178
        %v1219 = vmul.f32 %v741, %v1179
        %v1220 = vmul.f32 %v742, %v1180
        %v1221 = vmul.f32 %v743, %v1181
        %v1222 = vmul.f32 %v744, %v1182
        %v1223 = vmul.f32 %v745, %v1183
        %v1224 = vmul.f32 %v746, %v1184
        %v1225 = vmul.f32 %v747, %v1185
        %v1226 = vmul.f32 %v748, %v1186
        %v1227 = vmul.f32 %v749, %v1187
        %v1228 = vmul.f32 %v750, %v1188
        %v1229 = vadd.f32 %v1189, %v1197
        %v1230 = vadd.f32 %v1190, %v1198
        %v1231 = vadd.f32 %v1191, %v1199
        %v1232 = vadd.f32 %v1192, %v1200
        %v1233 = vadd.f32 %v1193, %v1201
        %v1234 = vadd.f32 %v1194, %v1202
        %v1235 = vadd.f32 %v1195, %v1203
        %v1236 = vadd.f32 %v1196, %v1204
        %v1237 = vadd.f32 %v1229, %v1205
        %v1238 = vadd.f32 %v1230, %v1206
        %v1239 = vadd.f32 %v1231, %v1207
        %v1240 = vadd.f32 %v1232, %v1208
        %v1241 = vadd.f32 %v1233, %v1209
        %v1242 = vadd.f32 %v1234, %v1210
        %v1243 = vadd.f32 %v1235, %v1211
        %v1244 = vadd.f32 %v1236, %v1212
        %v1245 = vadd.f32 %v1237, %v1213
        %v1246 = vadd.f32 %v1238, %v1214
        %v1247 = vadd.f32 %v1239, %v1215
        %v1248 = vadd.f32 %v1240, %v1216
        %v1249 = vadd.f32 %v1241, %v1217
        %v1250 = vadd.f32 %v1242, %v1218
        %v1251 = vadd.f32 %v1243, %v1219
        %v1252 = vadd.f32 %v1244, %v1220
        %v1253 = vadd.f32 %v1245, %v1221
        %v1254 = vadd.f32 %v1246, %v1222
        %v1255 = vadd.f32 %v1247, %v1223
        %v1256 = vadd.f32 %v1248, %v1224
        %v1257 = vadd.f32 %v1249, %v1225
        %v1258 = vadd.f32 %v1250, %v1226
        %v1259 = vadd.f32 %v1251, %v1227
        %v1260 = vadd.f32 %v1252, %v1228
        %v1261 = vtanh.pop %v1253
        %v1262 = vtanh.pop %v1254
        %v1263 = vtanh.pop %v1255
        %v1264 = vtanh.pop %v1256
        %v1265 = vtanh.pop %v1257
        %v1266 = vtanh.pop %v1258
        %v1267 = vtanh.pop %v1259
        %v1268 = vtanh.pop %v1260
        %v1269 = vmul.f32 %v1261, %v1261
        %v1270 = vmul.f32 %v1262, %v1262
        %v1271 = vmul.f32 %v1263, %v1263
        %v1272 = vmul.f32 %v1264, %v1264
        %v1273 = vmul.f32 %v1265, %v1265
        %v1274 = vmul.f32 %v1266, %v1266
        %v1275 = vmul.f32 %v1267, %v1267
        %v1276 = vmul.f32 %v1268, %v1268
        %v1277 = vadd.f32 %v1269, %v1271
        %v1278 = vadd.f32 %v1277, %v1273
        %v1279 = vadd.f32 %v1278, %v1275
        %v1280 = vrot.slane %v1279, 4
        %v1281 = vadd.f32 %v1279, %v1280
        %v1282 = vrot.slane %v1281, 2
        %v1283 = vadd.f32 %v1281, %v1282
        %v1284 = vrot.slane %v1283, 1
        %v1285 = vadd.f32 %v1283, %v1284
        %v1286 = vadd.f32 %v1270, %v1272
        %v1287 = vadd.f32 %v1286, %v1274
        %v1288 = vadd.f32 %v1287, %v1276
        %v1289 = vrot.slane %v1288, 4
        %v1290 = vadd.f32 %v1288, %v1289
        %v1291 = vrot.slane %v1290, 2
        %v1292 = vadd.f32 %v1290, %v1291
        %v1293 = vrot.slane %v1292, 1
        %v1294 = vadd.f32 %v1292, %v1293
        %v1295 = vrsqrt.pop %v1285
        %v1296 = vmul.f32 %v1285, %v1295
        %vm1297 = vcmp.eq.f32.partialorder %v1285, inf
        %v1298 = vsel %vm1297, %v1285, %v1296
        %vm1299 = vcmp.eq.f32.partialorder %v1285, 0.0
        %v1300 = vand.u32 %v1285, 2147483648
        %v1301 = vsel %vm1299, %v1300, %v1298
        %v1302 = vrsqrt.pop %v1294
        %v1303 = vmul.f32 %v1294, %v1302
        %vm1304 = vcmp.eq.f32.partialorder %v1294, inf
        %v1305 = vsel %vm1304, %v1294, %v1303
        %vm1306 = vcmp.eq.f32.partialorder %v1294, 0.0
        %v1307 = vand.u32 %v1294, 2147483648
        %v1308 = vsel %vm1306, %v1307, %v1305
        %v1309 = vadd.f32 %v1301, 1e-12
        %v1310 = vadd.f32 %v1308, 1e-12
        %v1311 = vrcp.pop %v1309
        %v1312 = vmul.f32 %v1261, %v1311
        %v1313 = vrcp.pop %v1310
        %v1314 = vmul.f32 %v1262, %v1313
        %v1315 = vmul.f32 %v1263, %v1311
        %v1316 = vmul.f32 %v1264, %v1313
        %v1317 = vmul.f32 %v1265, %v1311
        %v1318 = vmul.f32 %v1266, %v1313
        %v1319 = vmul.f32 %v1267, %v1311
        %v1320 = vmul.f32 %v1268, %v1313
        %1321 = vst [vmem:[%s295] sm:$0xff] %v1312
        %1322 = vst [vmem:[%s295 + $0x8] sm:$0xff] %v1314
        %1323 = vst [vmem:[%s295 + $0x10] sm:$0xff] %v1315
        %1324 = vst [vmem:[%s295 + $0x18] sm:$0xff] %v1316
        %1325 = vst [vmem:[%s295 + $0x20] sm:$0xff] %v1317
        %1326 = vst [vmem:[%s295 + $0x28] sm:$0xff] %v1318
        %1327 = vst [vmem:[%s295 + $0x30] sm:$0xff] %v1319
        %1328 = vst [vmem:[%s295 + $0x38] sm:$0xff] %v1320
        %s1329 = sand.u32 %s182, 1
        %s1330 = scalar_lea.sflag [#allocation3], %s1329
        %s1331 = sand.u32 %s182, 1
        %s1332 = smul.addr %s1331, 64
        %s1333 = scalar_lea.vmem [#allocation2], %s1332
        // Predicated region
        $region45: #{tpu_custom_call.1} parent=43 // pred_check
          %p1334 = pneg %p192
        $region46: #{tpu_custom_call.1} parent=43 // pred_check_branch
          %1336 = sbr.rel (%p1334) target = $region48
        $region47: #{tpu_custom_call.1} parent=43 // pred_region
          %s1337 = smul.u32 2, %s25
          %s1339 = ssub.s32 1024, 1024
          %1340 = vsyncadd %s1330, %s1339
          %s1341 = smul.addr %s24, 8
          %s1342 = sadd.s32 %s1337, %s1341
          %s1343 = smul.addr %s1342, 128
          %s1344 = scalar_lea.hbm %s6, %s1343
          %s1345 = sshll.u32 %s1333, 4
          %s1346 = int_to_ptr.vmem [resolvable:$true] %s1345
          %1351 = dma.vmem_to_hbm [thread:$0]  %s1346, 1024, %s1344, %s1330, 256, 256, 16
        $region48: #{tpu_custom_call.1} parent=43 // pred_fallthru
          _
      $region44: #{tpu_custom_call.1} parent=5 // pred_fallthru
        _
      %p1352 = scmp.le.s32.totalorder 2, %s15
      // Predicated region
      $region49: #{tpu_custom_call.1} parent=5 // pred_check
        %p1353 = pneg %p1352
      $region50: #{tpu_custom_call.1} parent=5 // pred_check_branch
        %1355 = sbr.rel (%p1353) target = $region52
      $region51: #{tpu_custom_call.1} parent=5 // pred_region
        %s1356 = ssub.s32 %s15, 2
        // Predicated region
        $region53: #{tpu_custom_call.1} parent=51 // pred_check
          %p1357 = pneg %p198
        $region54: #{tpu_custom_call.1} parent=51 // pred_check_branch
          %1359 = sbr.rel (%p1357) target = $region56
        $region55: #{tpu_custom_call.1} parent=51 // pred_region
          %s1360 = sand.u32 %s183, 1
          %s1361 = scalar_lea.sflag [#allocation3], %s1360
          %s1362 = sand.u32 %s183, 1
          %s1363 = smul.addr %s1362, 64
          %s1364 = scalar_lea.vmem [#allocation2], %s1363
          %1365 = dma.done %s1361, 1024
        $region56: #{tpu_custom_call.1} parent=51 // pred_fallthru
          _
      $region52: #{tpu_custom_call.1} parent=5 // pred_fallthru
        _
    $region6: #{tpu_custom_call.1} parent=1 // loop_footer
      %s19 = sadd.s32 1, %s15
    $region7: #{tpu_custom_call.1} parent=1 // loop_footer_branch
      %14 = sbr.rel target = $region3
    $region8: #{tpu_custom_call.1} parent=1 // loop_exit
      _
    %1366 = vsyncpa [#allocation3], 1
    %s1367 = scalar_lea.sflag [#allocation3], 1
    %1368 = vsyncpa %s1367, 1

</llo_original>
